<compile_context>
chip_gen: v7x
topology: tpu7x:2x2x1
jax: 0.10.0
libtpu: 0.0.40
codegen_flags: <defaults>
</compile_context>

<pallas_src>
import functools

import numpy as np
import jax
import jax.numpy as jnp
from jax.experimental import pallas as pl
from jax.experimental.pallas import tpu as pltpu


# ----------------------------------------------------------------------------
# Fused whole-network kernel: one grid program per batch element
# ----------------------------------------------------------------------------
def _sincnet_fused_kernel(*refs, n_blocks):
    """refs = [x, (w2, bn_scale, bn_shift, sel) * n_blocks, w_fc_t, b_fc, out].

    Per grid program (one zero-bordered batch segment):
      x block      : (1, C0, S0)
      w2           : (Cout, K*Cin)   depthwise x grouped-pointwise folded weights
      bn_scale/sh  : (Cout, 1)       inference BatchNorm folded to affine
      sel          : (S_conv, S_next) pool/stride/re-border selection matrix,
                     or (1, S_conv) pooled + global-average row for last block
      w_fc_t, b_fc : (L, C_last), (L, 1)
      out block    : (1, L, 1)
    """
    x_ref = refs[0]
    o_ref = refs[-1]
    cur = x_ref[0]                                   # (C0, S0)

    idx = 1
    y = None
    sel = None
    for i in range(n_blocks):
        w2 = refs[idx][...]                          # (Cout, K*Cin)
        bn_scale = refs[idx + 1][...]                # (Cout, 1)
        bn_shift = refs[idx + 2][...]                # (Cout, 1)
        sel = refs[idx + 3][...]                     # (S_conv, S_next)/(1, S_conv)
        idx += 4

        cin, s_in = cur.shape
        k = w2.shape[1] // cin
        s_conv = s_in - (k - 1)

        # Stack the K tap-shifted copies of the activation; a single MXU matmul
        # with contraction dim K*Cin replaces the depthwise VALU tap loop plus
        # the separate grouped-pointwise matmul.
        parts = [cur[:, kk:kk + s_conv] for kk in range(k)]
        stacked = jnp.concatenate(parts, axis=0)                  # (K*Cin, S_conv)
        y = jnp.dot(w2, stacked, preferred_element_type=jnp.float32)
        y = jnp.maximum(y, 0.0)                                   # ReLU
        y = y * bn_scale + bn_shift                               # BatchNorm (eval)

        if i < n_blocks - 1:
            # AvgPool1d + conv strides + zero re-border for the next block,
            # folded into one per-segment selection matmul (M = Cout rows).
            cur = jnp.dot(y, sel, preferred_element_type=jnp.float32)

    # Head.  The Linear layer commutes with the (linear) pooling reductions, so
    # apply it first as a proper matmul, then collapse AvgPool + global average
    # with a VPU multiply + lane-sum (sel row already carries 1/pool * 1/l3).
    w_fc_t = refs[idx][...]                           # (L, C_last)
    b_fc = refs[idx + 1][...]                         # (L, 1)
    z = jnp.dot(w_fc_t, y, preferred_element_type=jnp.float32)    # (L, S_conv)
    out = jnp.sum(z * sel, axis=1, keepdims=True) + b_fc           # (L, 1)
    o_ref[0] = out.astype(o_ref.dtype)


# ----------------------------------------------------------------------------
# Host-side (numpy / tiny jnp) parameter & layout folding
# ----------------------------------------------------------------------------
def _pool_select_matrix(t_in, k, stride, pcstride, pool, pad_next, last):
    """Per-segment matrix mapping dense conv positions -> next segment.

    Folds: depthwise conv stride, pointwise conv stride, AvgPool1d(pool,
    stride=pool, padding=pool//2, count_include_pad=True), the zero re-border
    for the next block, and (if last) AdaptiveAvgPool1d(1)."""
    pad = k // 2
    s_in = t_in + 2 * pad
    s_conv = s_in - (k - 1)                      # dense conv positions / segment
    l1 = (s_in - k) // stride + 1                # depthwise output length
    l2 = (l1 - 1) // pcstride + 1                # pointwise output length
    p_pad = pool // 2
    l3 = (l2 + 2 * p_pad - pool) // pool + 1     # AvgPool output length
    if last:
        # Row folding AvgPool and the head's global average; kept in f32
        # because 1/l3 is generally not exactly representable in bf16.
        sel = np.zeros((1, s_conv), np.float32)
    else:
        s_next = l3 + 2 * pad_next
        sel = np.zeros((s_conv, s_next), np.float32)
    for n in range(l3):
        for r in range(pool):
            m = n * pool - p_pad + r             # pointwise-output tap index
            if 0 <= m < l2:                      # count_include_pad=True divisor
                t = m * pcstride * stride        # dense conv position of tap
                if last:
                    sel[0, t] += 1.0 / (pool * l3)
                else:
                    sel[t, pad_next + n] += 1.0 / pool
    return sel, l3


def _fold_conv_weights(w_dw, w_pw, groups):
    """Fold depthwise (Cin, K) and grouped 1x1 (Cout, Cin//groups) weights into
    one (Cout, K*Cin) matrix matching the in-kernel tap-stacked operand
    (row order: tap-major, channel-minor)."""
    cin, k = w_dw.shape
    cout, cin_g = w_pw.shape
    if groups == 1:
        w_pw_bd = w_pw
    else:
        cout_g = cout // groups
        w_pw_bd = jnp.zeros((cout, cin), w_pw.dtype)
        for g in range(groups):
            w_pw_bd = w_pw_bd.at[g * cout_g:(g + 1) * cout_g,
                                 g * cin_g:(g + 1) * cin_g].set(
                                     w_pw[g * cout_g:(g + 1) * cout_g])
    # [o, kk, c] = w_pw_bd[o, c] * w_dw[c, kk]  ->  reshape to (Cout, K*Cin)
    w2 = (w_pw_bd[:, None, :] * jnp.transpose(w_dw)[None, :, :]).reshape(
        cout, k * cin)
    return w2


# ----------------------------------------------------------------------------
# Forward pass (one pallas_call, parallel batch grid)
# ----------------------------------------------------------------------------
def sincnet_forward(x, params, config):
    """x: (B, C0, T) float32 -> (B, n_labels) float32 (inference)."""
    B, C0, T = x.shape
    ks = config["dsconv_filt_len"]
    strides = config["dsconv_stride"]
    pcs = config["dsconv_pcstride"]
    grps = config["dsconv_groups"]
    pools = config["dsconv_avg_pool_len"]
    n_blocks = len(config["dsconv_N_filt"])

    # Zero-bordered per-batch input segment for block 0: (B, C0, T + 2*pad0).
    pad0 = ks[0] // 2
    S0 = T + 2 * pad0
    x_seg = jnp.pad(x, ((0, 0), (0, 0), (pad0, pad0)))

    inputs = [x_seg]
    in_specs = [pl.BlockSpec((1, C0, S0), lambda b: (b, 0, 0))]

    t_in = T
    for i in range(n_blocks):
        last = i == n_blocks - 1
        pad_next = 0 if last else ks[i + 1] // 2
        sel, t_out = _pool_select_matrix(t_in, ks[i], strides[i], pcs[i],
                                         pools[i], pad_next, last)
        p = params["blocks"][i]
        w2 = _fold_conv_weights(p["w_dw"], p["w_pw"], grps[i])
        blk_inputs = [w2, p["bn_scale"], p["bn_shift"], jnp.asarray(sel)]
        inputs += blk_inputs
        in_specs += [pl.BlockSpec(a.shape, lambda b: (0, 0)) for a in blk_inputs]
        t_in = t_out

    w_fc_t = params["w_fc"].T                        # (L, C_last)
    b_fc = params["b_fc"].reshape(-1, 1)             # (L, 1)
    inputs += [w_fc_t, b_fc]
    in_specs += [pl.BlockSpec(w_fc_t.shape, lambda b: (0, 0)),
                 pl.BlockSpec(b_fc.shape, lambda b: (0, 0))]
    L = w_fc_t.shape[0]

    # Explicit scoped-VMEM budget (v5e default is ~16 MiB; cap below v7x's
    # 64 MiB physical).  Everything here is per-segment, so tiny.
    total_in_bytes = sum(int(a.size) * 4 for a in inputs)
    vmem_limit = int(min(64 * 2 ** 20, max(32 * 2 ** 20, 8 * total_in_bytes)))

    out = pl.pallas_call(
        functools.partial(_sincnet_fused_kernel, n_blocks=n_blocks),
        out_shape=jax.ShapeDtypeStruct((B, L, 1), jnp.float32),
        grid=(B,),
        in_specs=in_specs,
        out_specs=pl.BlockSpec((1, L, 1), lambda b: (b, 0, 0)),
        compiler_params=pltpu.CompilerParams(
            dimension_semantics=("parallel",),
            vmem_limit_bytes=vmem_limit),
    )(*inputs)
    # Note: the (L, 1) per-program store is lane-sparse but negligible at this
    # head size; for large batches emit a lane-dense (B, L_pad) slab instead.
    return out[:, :, 0]                              # (B, L)


# ----------------------------------------------------------------------------
# Deterministic synthetic parameters
# ----------------------------------------------------------------------------
def init_params(key, config):
    params = {"blocks": []}
    n_blocks = len(config["dsconv_N_filt"])
    keys = jax.random.split(key, n_blocks * 6 + 2)
    ki = 0
    cin = config["height"]
    eps = 1e-5
    for i, cout in enumerate(config["dsconv_N_filt"]):
        k = config["dsconv_filt_len"][i]
        g = config["dsconv_groups"][i]
        w_dw = 0.3 * jax.random.normal(keys[ki], (cin, k), jnp.float32); ki += 1
        w_pw = 0.3 * jax.random.normal(keys[ki], (cout, cin // g), jnp.float32); ki += 1
        gamma = 1.0 + 0.1 * jax.random.normal(keys[ki], (cout,), jnp.float32); ki += 1
        beta = 0.1 * jax.random.normal(keys[ki], (cout,), jnp.float32); ki += 1
        mean = 0.1 * jax.random.normal(keys[ki], (cout,), jnp.float32); ki += 1
        var = jnp.abs(jax.random.normal(keys[ki], (cout,), jnp.float32)) + 0.5; ki += 1
        scale = gamma / jnp.sqrt(var + eps)
        shift = beta - mean * scale
        params["blocks"].append(dict(
            w_dw=w_dw, w_pw=w_pw,
            bn_scale=scale.reshape(cout, 1), bn_shift=shift.reshape(cout, 1)))
        cin = cout
    n_labels = config["n_labels"]
    params["w_fc"] = 0.3 * jax.random.normal(keys[ki], (cin, n_labels), jnp.float32); ki += 1
    params["b_fc"] = 0.1 * jax.random.normal(keys[ki], (1, n_labels), jnp.float32)
    return params


# Plain-JAX reference (no Pallas) for a correctness cross-check.
def reference_forward(x, params, config):
    for i, p in enumerate(params["blocks"]):
        k = config["dsconv_filt_len"][i]
        s = config["dsconv_stride"][i]
        pcs = config["dsconv_pcstride"][i]
        g = config["dsconv_groups"][i]
        pool = config["dsconv_avg_pool_len"][i]
        pad = k // 2
        B, Cin, T = x.shape
        t_conv = (T + 2 * pad - k) // s + 1
        xpad = jnp.pad(x, ((0, 0), (0, 0), (pad, pad)))
        y = jnp.zeros((B, Cin, t_conv), jnp.float32)
        for kk in range(k):
            y = y + p["w_dw"][None, :, kk:kk + 1] * xpad[:, :, kk:kk + (t_conv - 1) * s + 1:s]
        y = y[:, :, ::pcs]                       # pointwise-conv stride
        cin_g = Cin // g
        cout = p["w_pw"].shape[0]
        cout_g = cout // g
        outs = [jnp.einsum("oc,bct->bot",
                           p["w_pw"][gi * cout_g:(gi + 1) * cout_g],
                           y[:, gi * cin_g:(gi + 1) * cin_g])
                for gi in range(g)]
        y = jnp.concatenate(outs, axis=1)
        y = jnp.maximum(y, 0.0)
        y = y * p["bn_scale"][None] + p["bn_shift"][None]
        p_pad = pool // 2
        t_pc = y.shape[2]
        t_pool = (t_pc + 2 * p_pad - pool) // pool + 1
        ypad = jnp.pad(y, ((0, 0), (0, 0), (p_pad, p_pad)))
        x = sum(ypad[:, :, j:j + (t_pool - 1) * pool + 1:pool]
                for j in range(pool)) / float(pool)
    pooled = jnp.mean(x, axis=-1)
    return pooled @ params["w_fc"] + params["b_fc"]


if __name__ == "__main__":
    config = dict(
        height=4,
        n_labels=6,
        dsconv_N_filt=[16, 32],
        dsconv_filt_len=[5, 5],
        dsconv_stride=[1, 1],
        dsconv_pcstride=[1, 1],
        dsconv_groups=[2, 4],
        dsconv_avg_pool_len=[2, 2],
        dsconv_bn_len=[16, 32],
        dsconv_spatDrop=[0.0, 0.0],
    )
    key = jax.random.PRNGKey(0)
    kx, kp = jax.random.split(key)
    x = jax.random.normal(kx, (2, config["height"], 64), jnp.float32)
    params = init_params(kp, config)

    fwd = jax.jit(lambda xx, pp: sincnet_forward(xx, pp, config))
    out = jax.block_until_ready(fwd(x, params))

    ref = reference_forward(x, params, config)
    assert out.shape == (2, config["n_labels"]), out.shape
    if not jnp.allclose(out, ref, atol=1e-4, rtol=1e-4):
        raise AssertionError("Pallas output does not match reference")
    print("KERNEL_OK")
</pallas_src>

<mosaic_0001>
module attributes {stable_mosaic.version = 11 : i64} {
  func.func @_sincnet_fused_kernel(%arg0: i32, %arg1: memref<1x4x68xf32, #tpu.memory_space<vmem>>, %arg2: memref<16x20xf32, #tpu.memory_space<vmem>>, %arg3: memref<16x1xf32, #tpu.memory_space<vmem>>, %arg4: memref<16x1xf32, #tpu.memory_space<vmem>>, %arg5: memref<64x37xf32, #tpu.memory_space<vmem>>, %arg6: memref<32x80xf32, #tpu.memory_space<vmem>>, %arg7: memref<32x1xf32, #tpu.memory_space<vmem>>, %arg8: memref<32x1xf32, #tpu.memory_space<vmem>>, %arg9: memref<1x33xf32, #tpu.memory_space<vmem>>, %arg10: memref<6x32xf32, #tpu.memory_space<vmem>>, %arg11: memref<6x1xf32, #tpu.memory_space<vmem>>, %arg12: memref<1x6x1xf32, #tpu.memory_space<vmem>>) attributes {dimension_semantics = [#tpu.dimension_semantics<parallel>], iteration_bounds = array<i64: 2>, scalar_prefetch = 0 : i64, scratch_operands = 0 : i64, tpu.core_type = #tpu.core_type<tc>, window_params = [{transform_indices = @transform_0, window_bounds = array<i64: 1, 4, 68>}, {pipeline_mode = #tpu.pipeline_mode<synchronous>, transform_indices = @transform_1, window_bounds = array<i64: 16, 20>}, {pipeline_mode = #tpu.pipeline_mode<synchronous>, transform_indices = @transform_2, window_bounds = array<i64: 16, 1>}, {pipeline_mode = #tpu.pipeline_mode<synchronous>, transform_indices = @transform_3, window_bounds = array<i64: 16, 1>}, {pipeline_mode = #tpu.pipeline_mode<synchronous>, transform_indices = @transform_4, window_bounds = array<i64: 64, 37>}, {pipeline_mode = #tpu.pipeline_mode<synchronous>, transform_indices = @transform_5, window_bounds = array<i64: 32, 80>}, {pipeline_mode = #tpu.pipeline_mode<synchronous>, transform_indices = @transform_6, window_bounds = array<i64: 32, 1>}, {pipeline_mode = #tpu.pipeline_mode<synchronous>, transform_indices = @transform_7, window_bounds = array<i64: 32, 1>}, {pipeline_mode = #tpu.pipeline_mode<synchronous>, transform_indices = @transform_8, window_bounds = array<i64: 1, 33>}, {pipeline_mode = #tpu.pipeline_mode<synchronous>, transform_indices = @transform_9, window_bounds = array<i64: 6, 32>}, {pipeline_mode = #tpu.pipeline_mode<synchronous>, transform_indices = @transform_10, window_bounds = array<i64: 6, 1>}, {transform_indices = @transform_11, window_bounds = array<i64: 1, 6, 1>}]} {
    %c0 = arith.constant 0 : index
    %c0_0 = arith.constant 0 : index
    %c0_1 = arith.constant 0 : index
    %0 = vector.load %arg1[%c0, %c0_0, %c0_1] : memref<1x4x68xf32, #tpu.memory_space<vmem>>, vector<1x4x68xf32>
    %1 = vector.shape_cast %0 : vector<1x4x68xf32> to vector<4x68xf32>
    %c0_2 = arith.constant 0 : index
    %c0_3 = arith.constant 0 : index
    %2 = vector.load %arg2[%c0_2, %c0_3] : memref<16x20xf32, #tpu.memory_space<vmem>>, vector<16x20xf32>
    %c0_4 = arith.constant 0 : index
    %c0_5 = arith.constant 0 : index
    %3 = vector.load %arg3[%c0_4, %c0_5] : memref<16x1xf32, #tpu.memory_space<vmem>>, vector<16x1xf32>
    %c0_6 = arith.constant 0 : index
    %c0_7 = arith.constant 0 : index
    %4 = vector.load %arg4[%c0_6, %c0_7] : memref<16x1xf32, #tpu.memory_space<vmem>>, vector<16x1xf32>
    %c0_8 = arith.constant 0 : index
    %c0_9 = arith.constant 0 : index
    %5 = vector.load %arg5[%c0_8, %c0_9] : memref<64x37xf32, #tpu.memory_space<vmem>>, vector<64x37xf32>
    %6 = vector.extract_strided_slice %1 {offsets = [0, 0], sizes = [4, 64], strides = [1, 1]} : vector<4x68xf32> to vector<4x64xf32>
    %7 = vector.extract_strided_slice %1 {offsets = [0, 1], sizes = [4, 64], strides = [1, 1]} : vector<4x68xf32> to vector<4x64xf32>
    %8 = vector.extract_strided_slice %1 {offsets = [0, 2], sizes = [4, 64], strides = [1, 1]} : vector<4x68xf32> to vector<4x64xf32>
    %9 = vector.extract_strided_slice %1 {offsets = [0, 3], sizes = [4, 64], strides = [1, 1]} : vector<4x68xf32> to vector<4x64xf32>
    %10 = vector.extract_strided_slice %1 {offsets = [0, 4], sizes = [4, 64], strides = [1, 1]} : vector<4x68xf32> to vector<4x64xf32>
    %11 = tpu.concatenate %6, %7, %8, %9, %10 in 0 : vector<4x64xf32>, vector<4x64xf32>, vector<4x64xf32>, vector<4x64xf32>, vector<4x64xf32> -> vector<20x64xf32>
    %cst = arith.constant dense<0.000000e+00> : vector<16x64xf32>
    %12 = tpu.matmul %2, %11, %cst {dimension_numbers = #tpu.dot_dimension_numbers<[1], [0], [0], [1], [0, 0, 1, 1], [], []>} : vector<16x20xf32>, vector<20x64xf32>, vector<16x64xf32> -> vector<16x64xf32>
    %cst_10 = arith.constant 0.000000e+00 : f32
    %13 = vector.broadcast %cst_10 : f32 to vector<16x64xf32>
    %14 = arith.maximumf %12, %13 : vector<16x64xf32>
    %15 = vector.broadcast %3 : vector<16x1xf32> to vector<16x64xf32>
    %16 = arith.mulf %14, %15 : vector<16x64xf32>
    %17 = vector.broadcast %4 : vector<16x1xf32> to vector<16x64xf32>
    %18 = arith.addf %16, %17 : vector<16x64xf32>
    %cst_11 = arith.constant dense<0.000000e+00> : vector<16x37xf32>
    %19 = tpu.matmul %18, %5, %cst_11 {dimension_numbers = #tpu.dot_dimension_numbers<[1], [0], [0], [1], [0, 0, 1, 1], [], []>} : vector<16x64xf32>, vector<64x37xf32>, vector<16x37xf32> -> vector<16x37xf32>
    %c0_12 = arith.constant 0 : index
    %c0_13 = arith.constant 0 : index
    %20 = vector.load %arg6[%c0_12, %c0_13] : memref<32x80xf32, #tpu.memory_space<vmem>>, vector<32x80xf32>
    %c0_14 = arith.constant 0 : index
    %c0_15 = arith.constant 0 : index
    %21 = vector.load %arg7[%c0_14, %c0_15] : memref<32x1xf32, #tpu.memory_space<vmem>>, vector<32x1xf32>
    %c0_16 = arith.constant 0 : index
    %c0_17 = arith.constant 0 : index
    %22 = vector.load %arg8[%c0_16, %c0_17] : memref<32x1xf32, #tpu.memory_space<vmem>>, vector<32x1xf32>
    %c0_18 = arith.constant 0 : index
    %c0_19 = arith.constant 0 : index
    %23 = vector.load %arg9[%c0_18, %c0_19] : memref<1x33xf32, #tpu.memory_space<vmem>>, vector<1x33xf32>
    %24 = vector.extract_strided_slice %19 {offsets = [0, 0], sizes = [16, 33], strides = [1, 1]} : vector<16x37xf32> to vector<16x33xf32>
    %25 = vector.extract_strided_slice %19 {offsets = [0, 1], sizes = [16, 33], strides = [1, 1]} : vector<16x37xf32> to vector<16x33xf32>
    %26 = vector.extract_strided_slice %19 {offsets = [0, 2], sizes = [16, 33], strides = [1, 1]} : vector<16x37xf32> to vector<16x33xf32>
    %27 = vector.extract_strided_slice %19 {offsets = [0, 3], sizes = [16, 33], strides = [1, 1]} : vector<16x37xf32> to vector<16x33xf32>
    %28 = vector.extract_strided_slice %19 {offsets = [0, 4], sizes = [16, 33], strides = [1, 1]} : vector<16x37xf32> to vector<16x33xf32>
    %29 = tpu.concatenate %24, %25, %26, %27, %28 in 0 : vector<16x33xf32>, vector<16x33xf32>, vector<16x33xf32>, vector<16x33xf32>, vector<16x33xf32> -> vector<80x33xf32>
    %cst_20 = arith.constant dense<0.000000e+00> : vector<32x33xf32>
    %30 = tpu.matmul %20, %29, %cst_20 {dimension_numbers = #tpu.dot_dimension_numbers<[1], [0], [0], [1], [0, 0, 1, 1], [], []>} : vector<32x80xf32>, vector<80x33xf32>, vector<32x33xf32> -> vector<32x33xf32>
    %cst_21 = arith.constant 0.000000e+00 : f32
    %31 = vector.broadcast %cst_21 : f32 to vector<32x33xf32>
    %32 = arith.maximumf %30, %31 : vector<32x33xf32>
    %33 = vector.broadcast %21 : vector<32x1xf32> to vector<32x33xf32>
    %34 = arith.mulf %32, %33 : vector<32x33xf32>
    %35 = vector.broadcast %22 : vector<32x1xf32> to vector<32x33xf32>
    %36 = arith.addf %34, %35 : vector<32x33xf32>
    %c0_22 = arith.constant 0 : index
    %c0_23 = arith.constant 0 : index
    %37 = vector.load %arg10[%c0_22, %c0_23] : memref<6x32xf32, #tpu.memory_space<vmem>>, vector<6x32xf32>
    %c0_24 = arith.constant 0 : index
    %c0_25 = arith.constant 0 : index
    %38 = vector.load %arg11[%c0_24, %c0_25] : memref<6x1xf32, #tpu.memory_space<vmem>>, vector<6x1xf32>
    %cst_26 = arith.constant dense<0.000000e+00> : vector<6x33xf32>
    %39 = tpu.matmul %37, %36, %cst_26 {dimension_numbers = #tpu.dot_dimension_numbers<[1], [0], [0], [1], [0, 0, 1, 1], [], []>} : vector<6x32xf32>, vector<32x33xf32>, vector<6x33xf32> -> vector<6x33xf32>
    %40 = vector.broadcast %23 : vector<1x33xf32> to vector<6x33xf32>
    %41 = arith.mulf %39, %40 : vector<6x33xf32>
    %cst_27 = arith.constant dense<0.000000e+00> : vector<6xf32>
    %42 = vector.multi_reduction <add>, %41, %cst_27 [1] : vector<6x33xf32> to vector<6xf32>
    %43 = vector.shape_cast %42 : vector<6xf32> to vector<6x1xf32>
    %44 = arith.addf %43, %38 : vector<6x1xf32>
    %c0_28 = arith.constant 0 : index
    %c0_29 = arith.constant 0 : index
    %c0_30 = arith.constant 0 : index
    %45 = vector.load %arg12[%c0_28, %c0_29, %c0_30] : memref<1x6x1xf32, #tpu.memory_space<vmem>>, vector<1x6x1xf32>
    %46 = vector.shape_cast %45 : vector<1x6x1xf32> to vector<6x1xf32>
    %47 = vector.shape_cast %44 : vector<6x1xf32> to vector<1x6x1xf32>
    tpu.vector_store %arg12[%c0_28, %c0_29, %c0_30], %47 {strides = array<i32>} : memref<1x6x1xf32, #tpu.memory_space<vmem>>, vector<1x6x1xf32>,
    return
  }
  func.func @transform_0(%arg0: i32) -> (i32, i32, i32) {
    %c0_i32 = arith.constant 0 : i32
    %c0_i32_0 = arith.constant 0 : i32
    %c0_i32_1 = arith.constant 0 : i32
    return %arg0, %c0_i32, %c0_i32_0 : i32, i32, i32
  }
  func.func @transform_1(%arg0: i32) -> (i32, i32) {
    %c0_i32 = arith.constant 0 : i32
    %c0_i32_0 = arith.constant 0 : i32
    %c0_i32_1 = arith.constant 0 : i32
    return %c0_i32, %c0_i32_0 : i32, i32
  }
  func.func @transform_2(%arg0: i32) -> (i32, i32) {
    %c0_i32 = arith.constant 0 : i32
    %c0_i32_0 = arith.constant 0 : i32
    %c0_i32_1 = arith.constant 0 : i32
    return %c0_i32, %c0_i32_0 : i32, i32
  }
  func.func @transform_3(%arg0: i32) -> (i32, i32) {
    %c0_i32 = arith.constant 0 : i32
    %c0_i32_0 = arith.constant 0 : i32
    %c0_i32_1 = arith.constant 0 : i32
    return %c0_i32, %c0_i32_0 : i32, i32
  }
  func.func @transform_4(%arg0: i32) -> (i32, i32) {
    %c0_i32 = arith.constant 0 : i32
    %c0_i32_0 = arith.constant 0 : i32
    %c0_i32_1 = arith.constant 0 : i32
    return %c0_i32, %c0_i32_0 : i32, i32
  }
  func.func @transform_5(%arg0: i32) -> (i32, i32) {
    %c0_i32 = arith.constant 0 : i32
    %c0_i32_0 = arith.constant 0 : i32
    %c0_i32_1 = arith.constant 0 : i32
    return %c0_i32, %c0_i32_0 : i32, i32
  }
  func.func @transform_6(%arg0: i32) -> (i32, i32) {
    %c0_i32 = arith.constant 0 : i32
    %c0_i32_0 = arith.constant 0 : i32
    %c0_i32_1 = arith.constant 0 : i32
    return %c0_i32, %c0_i32_0 : i32, i32
  }
  func.func @transform_7(%arg0: i32) -> (i32, i32) {
    %c0_i32 = arith.constant 0 : i32
    %c0_i32_0 = arith.constant 0 : i32
    %c0_i32_1 = arith.constant 0 : i32
    return %c0_i32, %c0_i32_0 : i32, i32
  }
  func.func @transform_8(%arg0: i32) -> (i32, i32) {
    %c0_i32 = arith.constant 0 : i32
    %c0_i32_0 = arith.constant 0 : i32
    %c0_i32_1 = arith.constant 0 : i32
    return %c0_i32, %c0_i32_0 : i32, i32
  }
  func.func @transform_9(%arg0: i32) -> (i32, i32) {
    %c0_i32 = arith.constant 0 : i32
    %c0_i32_0 = arith.constant 0 : i32
    %c0_i32_1 = arith.constant 0 : i32
    return %c0_i32, %c0_i32_0 : i32, i32
  }
  func.func @transform_10(%arg0: i32) -> (i32, i32) {
    %c0_i32 = arith.constant 0 : i32
    %c0_i32_0 = arith.constant 0 : i32
    %c0_i32_1 = arith.constant 0 : i32
    return %c0_i32, %c0_i32_0 : i32, i32
  }
  func.func @transform_11(%arg0: i32) -> (i32, i32, i32) {
    %c0_i32 = arith.constant 0 : i32
    %c0_i32_0 = arith.constant 0 : i32
    %c0_i32_1 = arith.constant 0 : i32
    return %arg0, %c0_i32, %c0_i32_0 : i32, i32, i32
  }
}

</mosaic_0001>

<llo_original>
// kernel: _lambda_.1
$region0: #{_lambda_.1}
  #allocation0 [shape = 'u32[]', space=smem, size = 0x4, offset = 0x4, fixed_abs, tag = 'smem constant byte address 0x4 - core index']
  #allocation1 [shape = 'u32[144,128]{1,0:T(1,128)}', space=vmem, size = 0x12000, scoped, tag = 'internal scratch']
  %s0 = inlined_call_operand.vmem [shape: f32[2,4,68], index: 0, kind: input, shape index: {}]
  %s1 = inlined_call_operand.vmem [shape: f32[16,20], index: 1, kind: input, shape index: {}]
  %s2 = inlined_call_operand.vmem [shape: f32[16,1], index: 2, kind: input, shape index: {}]
  %s3 = inlined_call_operand.vmem [shape: f32[16,1], index: 3, kind: input, shape index: {}]
  %s4 = inlined_call_operand.vmem [shape: f32[64,37], index: 4, kind: input, shape index: {}]
  %s5 = inlined_call_operand.vmem [shape: f32[32,80], index: 5, kind: input, shape index: {}]
  %s6 = inlined_call_operand.vmem [shape: f32[32,1], index: 6, kind: input, shape index: {}]
  %s7 = inlined_call_operand.vmem [shape: f32[32,1], index: 7, kind: input, shape index: {}]
  %s8 = inlined_call_operand.vmem [shape: f32[1,33], index: 8, kind: input, shape index: {}]
  %s9 = inlined_call_operand.vmem [shape: f32[6,32], index: 9, kind: input, shape index: {}]
  %s10 = inlined_call_operand.vmem [shape: f32[6,1], index: 10, kind: input, shape index: {}]
  %s11 = inlined_call_operand.vmem [shape: f32[2,6,1], index: 11, kind: output, shape index: {}]
  %s12 = sld [smem:[#allocation0]]
  $region77: #{_lambda_.1} parent=0
    _
  %s14 = ssub.s32 1, %s12
  %s15 = scalar_select 0, %s14, %s12
  loop: start=0, step=1, limit=4
  $region2: #{_lambda_.1} parent=0 // loop_pre_header
    _
  $region3: #{_lambda_.1} parent=0 // loop_header
    %s17 = sphi 0, %s21
    %p18 = scmp.ge.s32.totalorder %s17, 4
    %s27 = sphi 0, %s29
    %s30 = sphi 0, %s27
    %s31 = sphi 0, %s30
    %s47 = sphi 0, %s31
    %s51 = sphi 0, %s51
    %s53 = sphi 0, %s51
    %s54 = sphi 0, %s53
    %s68 = sphi 0, %s54
    %s72 = sphi 0, %s72
    %s74 = sphi 0, %s72
    %s75 = sphi 0, %s74
    %s89 = sphi 0, %s75
    %s93 = sphi 0, %s93
    %s95 = sphi 0, %s93
    %s96 = sphi 0, %s95
    %s110 = sphi 0, %s96
    %s114 = sphi 0, %s114
    %s116 = sphi 0, %s114
    %s117 = sphi 0, %s116
    %s131 = sphi 0, %s117
    %s135 = sphi 0, %s135
    %s137 = sphi 0, %s135
    %s138 = sphi 0, %s137
    %s152 = sphi 0, %s138
    %s156 = sphi 0, %s156
    %s158 = sphi 0, %s156
    %s159 = sphi 0, %s158
    %s173 = sphi 0, %s159
    %s177 = sphi 0, %s177
    %s179 = sphi 0, %s177
    %s180 = sphi 0, %s179
    %s194 = sphi 0, %s180
    %s198 = sphi 0, %s198
    %s200 = sphi 0, %s198
    %s201 = sphi 0, %s200
    %s215 = sphi 0, %s201
    %s219 = sphi 0, %s219
    %s221 = sphi 0, %s219
    %s222 = sphi 0, %s221
    %s236 = sphi 0, %s222
    %s240 = sphi 0, %s240
    %s242 = sphi 0, %s240
    %s243 = sphi 0, %s242
    %s257 = sphi 0, %s243
    %s263 = sphi 0, %s265
    %s266 = sphi 0, %s263
    %s267 = sphi 0, %s266
    %s283 = sphi 0, %s267
  $region4: #{_lambda_.1} parent=0 // loop_header_branch
    %20 = sbr.rel (%p18) target = $region8
  $region5: #{_lambda_.1} parent=0 // loop_body
    %s22 = ssub.s32 %s17, 1
    %s23 = ssub.s32 %s17, 2
    %s24 = sadd.s32 %s17, 1
    %s25 = ssub.s32 %s17, %s24
    %p26 = scmp.eq.s32.totalorder %s25, 0
    %s28 = sadd.s32 %s27, 1
    %s29 = scalar_select %p26, %s27, %s28
    %p32 = pneg %p26
    %p33 = scmp.eq.s32.totalorder %s17, 1
    %p34 = por %p32, %p33
    %p35 = scmp.ne.s32.totalorder %s27, %s30
    %p36 = scmp.eq.s32.totalorder %s17, 0
    %p37 = por %p35, %p36
    %p38 = scmp.ne.s32.totalorder %s27, %s30
    %p39 = scmp.eq.s32.totalorder %s22, 1
    %p40 = por %p38, %p39
    %p41 = scmp.ne.s32.totalorder %s30, %s31
    %p42 = scmp.eq.s32.totalorder %s22, 0
    %p43 = por %p41, %p42
    %p44 = scmp.ne.s32.totalorder %s30, %s31
    %p45 = scmp.eq.s32.totalorder %s23, 1
    %p46 = por %p44, %p45
    %p48 = scmp.ne.s32.totalorder %s31, %s47
    %p49 = scmp.eq.s32.totalorder %s23, 0
    %p50 = por %p48, %p49
    %s52 = sadd.s32 %s51, 1
    %p55 = scmp.eq.s32.totalorder %s17, 1
    %p56 = scmp.ne.s32.totalorder %s51, %s53
    %p57 = scmp.eq.s32.totalorder %s17, 0
    %p58 = por %p56, %p57
    %p59 = scmp.ne.s32.totalorder %s51, %s53
    %p60 = scmp.eq.s32.totalorder %s22, 1
    %p61 = por %p59, %p60
    %p62 = scmp.ne.s32.totalorder %s53, %s54
    %p63 = scmp.eq.s32.totalorder %s22, 0
    %p64 = por %p62, %p63
    %p65 = scmp.ne.s32.totalorder %s53, %s54
    %p66 = scmp.eq.s32.totalorder %s23, 1
    %p67 = por %p65, %p66
    %p69 = scmp.ne.s32.totalorder %s54, %s68
    %p70 = scmp.eq.s32.totalorder %s23, 0
    %p71 = por %p69, %p70
    %s73 = sadd.s32 %s72, 1
    %p76 = scmp.eq.s32.totalorder %s17, 1
    %p77 = scmp.ne.s32.totalorder %s72, %s74
    %p78 = scmp.eq.s32.totalorder %s17, 0
    %p79 = por %p77, %p78
    %p80 = scmp.ne.s32.totalorder %s72, %s74
    %p81 = scmp.eq.s32.totalorder %s22, 1
    %p82 = por %p80, %p81
    %p83 = scmp.ne.s32.totalorder %s74, %s75
    %p84 = scmp.eq.s32.totalorder %s22, 0
    %p85 = por %p83, %p84
    %p86 = scmp.ne.s32.totalorder %s74, %s75
    %p87 = scmp.eq.s32.totalorder %s23, 1
    %p88 = por %p86, %p87
    %p90 = scmp.ne.s32.totalorder %s75, %s89
    %p91 = scmp.eq.s32.totalorder %s23, 0
    %p92 = por %p90, %p91
    %s94 = sadd.s32 %s93, 1
    %p97 = scmp.eq.s32.totalorder %s17, 1
    %p98 = scmp.ne.s32.totalorder %s93, %s95
    %p99 = scmp.eq.s32.totalorder %s17, 0
    %p100 = por %p98, %p99
    %p101 = scmp.ne.s32.totalorder %s93, %s95
    %p102 = scmp.eq.s32.totalorder %s22, 1
    %p103 = por %p101, %p102
    %p104 = scmp.ne.s32.totalorder %s95, %s96
    %p105 = scmp.eq.s32.totalorder %s22, 0
    %p106 = por %p104, %p105
    %p107 = scmp.ne.s32.totalorder %s95, %s96
    %p108 = scmp.eq.s32.totalorder %s23, 1
    %p109 = por %p107, %p108
    %p111 = scmp.ne.s32.totalorder %s96, %s110
    %p112 = scmp.eq.s32.totalorder %s23, 0
    %p113 = por %p111, %p112
    %s115 = sadd.s32 %s114, 1
    %p118 = scmp.eq.s32.totalorder %s17, 1
    %p119 = scmp.ne.s32.totalorder %s114, %s116
    %p120 = scmp.eq.s32.totalorder %s17, 0
    %p121 = por %p119, %p120
    %p122 = scmp.ne.s32.totalorder %s114, %s116
    %p123 = scmp.eq.s32.totalorder %s22, 1
    %p124 = por %p122, %p123
    %p125 = scmp.ne.s32.totalorder %s116, %s117
    %p126 = scmp.eq.s32.totalorder %s22, 0
    %p127 = por %p125, %p126
    %p128 = scmp.ne.s32.totalorder %s116, %s117
    %p129 = scmp.eq.s32.totalorder %s23, 1
    %p130 = por %p128, %p129
    %p132 = scmp.ne.s32.totalorder %s117, %s131
    %p133 = scmp.eq.s32.totalorder %s23, 0
    %p134 = por %p132, %p133
    %s136 = sadd.s32 %s135, 1
    %p139 = scmp.eq.s32.totalorder %s17, 1
    %p140 = scmp.ne.s32.totalorder %s135, %s137
    %p141 = scmp.eq.s32.totalorder %s17, 0
    %p142 = por %p140, %p141
    %p143 = scmp.ne.s32.totalorder %s135, %s137
    %p144 = scmp.eq.s32.totalorder %s22, 1
    %p145 = por %p143, %p144
    %p146 = scmp.ne.s32.totalorder %s137, %s138
    %p147 = scmp.eq.s32.totalorder %s22, 0
    %p148 = por %p146, %p147
    %p149 = scmp.ne.s32.totalorder %s137, %s138
    %p150 = scmp.eq.s32.totalorder %s23, 1
    %p151 = por %p149, %p150
    %p153 = scmp.ne.s32.totalorder %s138, %s152
    %p154 = scmp.eq.s32.totalorder %s23, 0
    %p155 = por %p153, %p154
    %s157 = sadd.s32 %s156, 1
    %p160 = scmp.eq.s32.totalorder %s17, 1
    %p161 = scmp.ne.s32.totalorder %s156, %s158
    %p162 = scmp.eq.s32.totalorder %s17, 0
    %p163 = por %p161, %p162
    %p164 = scmp.ne.s32.totalorder %s156, %s158
    %p165 = scmp.eq.s32.totalorder %s22, 1
    %p166 = por %p164, %p165
    %p167 = scmp.ne.s32.totalorder %s158, %s159
    %p168 = scmp.eq.s32.totalorder %s22, 0
    %p169 = por %p167, %p168
    %p170 = scmp.ne.s32.totalorder %s158, %s159
    %p171 = scmp.eq.s32.totalorder %s23, 1
    %p172 = por %p170, %p171
    %p174 = scmp.ne.s32.totalorder %s159, %s173
    %p175 = scmp.eq.s32.totalorder %s23, 0
    %p176 = por %p174, %p175
    %s178 = sadd.s32 %s177, 1
    %p181 = scmp.eq.s32.totalorder %s17, 1
    %p182 = scmp.ne.s32.totalorder %s177, %s179
    %p183 = scmp.eq.s32.totalorder %s17, 0
    %p184 = por %p182, %p183
    %p185 = scmp.ne.s32.totalorder %s177, %s179
    %p186 = scmp.eq.s32.totalorder %s22, 1
    %p187 = por %p185, %p186
    %p188 = scmp.ne.s32.totalorder %s179, %s180
    %p189 = scmp.eq.s32.totalorder %s22, 0
    %p190 = por %p188, %p189
    %p191 = scmp.ne.s32.totalorder %s179, %s180
    %p192 = scmp.eq.s32.totalorder %s23, 1
    %p193 = por %p191, %p192
    %p195 = scmp.ne.s32.totalorder %s180, %s194
    %p196 = scmp.eq.s32.totalorder %s23, 0
    %p197 = por %p195, %p196
    %s199 = sadd.s32 %s198, 1
    %p202 = scmp.eq.s32.totalorder %s17, 1
    %p203 = scmp.ne.s32.totalorder %s198, %s200
    %p204 = scmp.eq.s32.totalorder %s17, 0
    %p205 = por %p203, %p204
    %p206 = scmp.ne.s32.totalorder %s198, %s200
    %p207 = scmp.eq.s32.totalorder %s22, 1
    %p208 = por %p206, %p207
    %p209 = scmp.ne.s32.totalorder %s200, %s201
    %p210 = scmp.eq.s32.totalorder %s22, 0
    %p211 = por %p209, %p210
    %p212 = scmp.ne.s32.totalorder %s200, %s201
    %p213 = scmp.eq.s32.totalorder %s23, 1
    %p214 = por %p212, %p213
    %p216 = scmp.ne.s32.totalorder %s201, %s215
    %p217 = scmp.eq.s32.totalorder %s23, 0
    %p218 = por %p216, %p217
    %s220 = sadd.s32 %s219, 1
    %p223 = scmp.eq.s32.totalorder %s17, 1
    %p224 = scmp.ne.s32.totalorder %s219, %s221
    %p225 = scmp.eq.s32.totalorder %s17, 0
    %p226 = por %p224, %p225
    %p227 = scmp.ne.s32.totalorder %s219, %s221
    %p228 = scmp.eq.s32.totalorder %s22, 1
    %p229 = por %p227, %p228
    %p230 = scmp.ne.s32.totalorder %s221, %s222
    %p231 = scmp.eq.s32.totalorder %s22, 0
    %p232 = por %p230, %p231
    %p233 = scmp.ne.s32.totalorder %s221, %s222
    %p234 = scmp.eq.s32.totalorder %s23, 1
    %p235 = por %p233, %p234
    %p237 = scmp.ne.s32.totalorder %s222, %s236
    %p238 = scmp.eq.s32.totalorder %s23, 0
    %p239 = por %p237, %p238
    %s241 = sadd.s32 %s240, 1
    %p244 = scmp.eq.s32.totalorder %s17, 1
    %p245 = scmp.ne.s32.totalorder %s240, %s242
    %p246 = scmp.eq.s32.totalorder %s17, 0
    %p247 = por %p245, %p246
    %p248 = scmp.ne.s32.totalorder %s240, %s242
    %p249 = scmp.eq.s32.totalorder %s22, 1
    %p250 = por %p248, %p249
    %p251 = scmp.ne.s32.totalorder %s242, %s243
    %p252 = scmp.eq.s32.totalorder %s22, 0
    %p253 = por %p251, %p252
    %p254 = scmp.ne.s32.totalorder %s242, %s243
    %p255 = scmp.eq.s32.totalorder %s23, 1
    %p256 = por %p254, %p255
    %p258 = scmp.ne.s32.totalorder %s243, %s257
    %p259 = scmp.eq.s32.totalorder %s23, 0
    %p260 = por %p258, %p259
    %s261 = ssub.s32 %s17, %s24
    %p262 = scmp.eq.s32.totalorder %s261, 0
    %s264 = sadd.s32 %s263, 1
    %s265 = scalar_select %p262, %s263, %s264
    %p268 = pneg %p262
    %p269 = scmp.eq.s32.totalorder %s17, 1
    %p270 = por %p268, %p269
    %p271 = scmp.ne.s32.totalorder %s263, %s266
    %p272 = scmp.eq.s32.totalorder %s17, 0
    %p273 = por %p271, %p272
    %p274 = scmp.ne.s32.totalorder %s263, %s266
    %p275 = scmp.eq.s32.totalorder %s22, 1
    %p276 = por %p274, %p275
    %p277 = scmp.ne.s32.totalorder %s266, %s267
    %p278 = scmp.eq.s32.totalorder %s22, 0
    %p279 = por %p277, %p278
    %p280 = scmp.ne.s32.totalorder %s266, %s267
    %p281 = scmp.eq.s32.totalorder %s23, 1
    %p282 = por %p280, %p281
    %p284 = scmp.ne.s32.totalorder %s267, %s283
    %p285 = scmp.eq.s32.totalorder %s23, 0
    %p286 = por %p284, %p285
    %p287 = scmp.le.s32.totalorder 1, %s17
    %p288 = scmp.lt.s32.totalorder %s17, 3
    %p289 = pnand %p287, %p288
    %p290 = pneg %p289
    // Predicated region
    $region9: #{_lambda_.1} parent=5 // pred_check
      _
    $region10: #{_lambda_.1} parent=5 // pred_check_branch
      %292 = sbr.rel (%p289) target = $region12
    $region11: #{_lambda_.1} parent=5 // pred_region
      %s293 = ssub.s32 %s17, 1
      // Predicated region
      $region13: #{_lambda_.1} parent=11 // pred_check
        %p294 = pneg %p64
      $region14: #{_lambda_.1} parent=11 // pred_check_branch
        %296 = sbr.rel (%p294) target = $region16
      $region15: #{_lambda_.1} parent=11 // pred_region
        _
      $region16: #{_lambda_.1} parent=11 // pred_fallthru
        _
      // Predicated region
      $region17: #{_lambda_.1} parent=11 // pred_check
        %p297 = pneg %p85
      $region18: #{_lambda_.1} parent=11 // pred_check_branch
        %299 = sbr.rel (%p297) target = $region20
      $region19: #{_lambda_.1} parent=11 // pred_region
        _
      $region20: #{_lambda_.1} parent=11 // pred_fallthru
        _
      // Predicated region
      $region21: #{_lambda_.1} parent=11 // pred_check
        %p300 = pneg %p106
      $region22: #{_lambda_.1} parent=11 // pred_check_branch
        %302 = sbr.rel (%p300) target = $region24
      $region23: #{_lambda_.1} parent=11 // pred_region
        _
      $region24: #{_lambda_.1} parent=11 // pred_fallthru
        _
      // Predicated region
      $region25: #{_lambda_.1} parent=11 // pred_check
        %p303 = pneg %p127
      $region26: #{_lambda_.1} parent=11 // pred_check_branch
        %305 = sbr.rel (%p303) target = $region28
      $region27: #{_lambda_.1} parent=11 // pred_region
        _
      $region28: #{_lambda_.1} parent=11 // pred_fallthru
        _
      // Predicated region
      $region29: #{_lambda_.1} parent=11 // pred_check
        %p306 = pneg %p148
      $region30: #{_lambda_.1} parent=11 // pred_check_branch
        %308 = sbr.rel (%p306) target = $region32
      $region31: #{_lambda_.1} parent=11 // pred_region
        _
      $region32: #{_lambda_.1} parent=11 // pred_fallthru
        _
      // Predicated region
      $region33: #{_lambda_.1} parent=11 // pred_check
        %p309 = pneg %p169
      $region34: #{_lambda_.1} parent=11 // pred_check_branch
        %311 = sbr.rel (%p309) target = $region36
      $region35: #{_lambda_.1} parent=11 // pred_region
        _
      $region36: #{_lambda_.1} parent=11 // pred_fallthru
        _
      // Predicated region
      $region37: #{_lambda_.1} parent=11 // pred_check
        %p312 = pneg %p190
      $region38: #{_lambda_.1} parent=11 // pred_check_branch
        %314 = sbr.rel (%p312) target = $region40
      $region39: #{_lambda_.1} parent=11 // pred_region
        _
      $region40: #{_lambda_.1} parent=11 // pred_fallthru
        _
      // Predicated region
      $region41: #{_lambda_.1} parent=11 // pred_check
        %p315 = pneg %p211
      $region42: #{_lambda_.1} parent=11 // pred_check_branch
        %317 = sbr.rel (%p315) target = $region44
      $region43: #{_lambda_.1} parent=11 // pred_region
        _
      $region44: #{_lambda_.1} parent=11 // pred_fallthru
        _
      // Predicated region
      $region45: #{_lambda_.1} parent=11 // pred_check
        %p318 = pneg %p232
      $region46: #{_lambda_.1} parent=11 // pred_check_branch
        %320 = sbr.rel (%p318) target = $region48
      $region47: #{_lambda_.1} parent=11 // pred_region
        _
      $region48: #{_lambda_.1} parent=11 // pred_fallthru
        _
      // Predicated region
      $region49: #{_lambda_.1} parent=11 // pred_check
        %p321 = pneg %p253
      $region50: #{_lambda_.1} parent=11 // pred_check_branch
        %323 = sbr.rel (%p321) target = $region52
      $region51: #{_lambda_.1} parent=11 // pred_region
        _
      $region52: #{_lambda_.1} parent=11 // pred_fallthru
        _
    $region12: #{_lambda_.1} parent=5 // pred_fallthru
      _
    %p324 = scmp.lt.s32.totalorder %s17, 2
    // Predicated region
    $region53: #{_lambda_.1} parent=5 // pred_check
      %p325 = pneg %p324
    $region54: #{_lambda_.1} parent=5 // pred_check_branch
      %327 = sbr.rel (%p325) target = $region56
    $region55: #{_lambda_.1} parent=5 // pred_region
      // Predicated region
      $region57: #{_lambda_.1} parent=55 // pred_check
        %p328 = pneg %p37
      $region58: #{_lambda_.1} parent=55 // pred_check_branch
        %330 = sbr.rel (%p328) target = $region60
      $region59: #{_lambda_.1} parent=55 // pred_region
        %p331 = scmp.lt.s32.totalorder %s17, 1
        %s332 = scalar_select %p331, %s17, 1
        %s333 = smul.addr %s332, 4
        %s334 = scalar_lea.vmem %s0, %s333
      $region60: #{_lambda_.1} parent=55 // pred_fallthru
        _
    $region56: #{_lambda_.1} parent=5 // pred_fallthru
      _
    %p335 = scmp.le.s32.totalorder 1, %s17
    %p336 = scmp.lt.s32.totalorder %s17, 3
    %p337 = pnand %p335, %p336
    %p338 = pneg %p337
    // Predicated region
    $region61: #{_lambda_.1} parent=5 // pred_check
      _
    $region62: #{_lambda_.1} parent=5 // pred_check_branch
      %340 = sbr.rel (%p337) target = $region64
    $region63: #{_lambda_.1} parent=5 // pred_region
      %s341 = ssub.s32 %s17, 1
      %p342 = scmp.lt.s32.totalorder %s22, 1
      %s343 = scalar_select %p342, %s22, 1
      %s344 = smul.addr %s343, 4
      %s345 = scalar_lea.vmem %s0, %s344
      %p346 = pneg %p43
      %p347 = pneg %p40
      %p348 = pneg %p64
      %p349 = pneg %p61
      %p350 = pneg %p85
      %p351 = pneg %p82
      %p352 = pneg %p106
      %p353 = pneg %p103
      %p354 = pneg %p127
      %p355 = pneg %p124
      %p356 = pneg %p148
      %p357 = pneg %p145
      %p358 = pneg %p169
      %p359 = pneg %p166
      %p360 = pneg %p190
      %p361 = pneg %p187
      %p362 = pneg %p211
      %p363 = pneg %p208
      %p364 = pneg %p232
      %p365 = pneg %p229
      %p366 = pneg %p253
      %p367 = pneg %p250
      %p368 = pneg %p279
      %p369 = pneg %p276
      %p370 = scmp.lt.s32.totalorder %s22, 1
      %s371 = scalar_select %p370, %s22, 1
      %s372 = smul.addr %s371, 8
      %s373 = scalar_lea.vmem %s11, %s372
      %p374 = scmp.lt.s32.totalorder %s22, 1
      %s375 = scalar_select %p374, %s22, 1
      %s376 = smul.addr %s375, 4
      %s377 = scalar_lea.vmem %s0, %s376
      %p378 = scmp.lt.s32.totalorder %s22, 1
      %s379 = scalar_select %p378, %s22, 1
      %s380 = smul.addr %s379, 8
      %s381 = scalar_lea.vmem %s11, %s380
      %v382 = vld [vmem:[%s377] sm:$0xf]
      %v383 = vld [vmem:[%s1] sm:$0xff]
      %v384 = vld [vmem:[%s1 + $0x8] sm:$0xff]
      %v385 = vld [vmem:[%s2] sm:$0xff]
      %v386 = vld [vmem:[%s2 + $0x8] sm:$0xff]
      %v387 = vld [vmem:[%s3] sm:$0xff]
      %v388 = vld [vmem:[%s3 + $0x8] sm:$0xff]
      %v389 = vld [vmem:[%s4] sm:$0xff]
      %v390 = vld [vmem:[%s4 + $0x8] sm:$0xff]
      %v391 = vld [vmem:[%s4 + $0x10] sm:$0xff]
      %v392 = vld [vmem:[%s4 + $0x18] sm:$0xff]
      %v393 = vld [vmem:[%s4 + $0x20] sm:$0xff]
      %v394 = vld [vmem:[%s4 + $0x28] sm:$0xff]
      %v395 = vld [vmem:[%s4 + $0x30] sm:$0xff]
      %v396 = vld [vmem:[%s4 + $0x38] sm:$0xff]
      %v398 = vrot.slane %v382, 4
      %399 = vrot.lane.b32.xlu0 %v398, 127
      %v400 = vpop.permute.xlu0 %399
      %402 = vrot.lane.b32.xlu0 %v382, 126
      %v403 = vpop.permute.xlu0 %402
      %405 = vrot.lane.b32.xlu0 %v398, 125
      %v406 = vpop.permute.xlu0 %405
      %408 = vrot.lane.b32.xlu0 %v382, 124
      %v409 = vpop.permute.xlu0 %408
      %vm410 = vcmask 1043456
      %v411 = vsel %vm410, %v382, %v400
      %v412 = vsel %vm410, %v403, %v406
      %vm413 = vcmask 162816
      %v415 = vsel %vm413, %v383, 0
      %v418 = vsel %vm413, %v384, 0
      %v420 = vsel %vm410, %v409, 0
      %422 = vmatprep.subr.mxu0 0.0
      %423 = vmatpush1.msra.mxu0 %v411
      %424 = vmatprep.subr.mxu0 0.0
      %425 = vmatpush1.msra.mxu0 %v412
      %426 = vmatprep.subr.mxu0 0.0
      %427 = vmatpush1.msra.mxu0 %v420
      %428 = vmatprep.subr.mxu0 0.0
      %429 = vmatpush1.msra.mxu0 0.0
      %430 = vmatprep.subr.mxu0 0.0
      %431 = vmatpush1.msra.mxu0 0.0
      %432 = vmatprep.subr.mxu0 0.0
      %433 = vmatpush1.msra.mxu0 0.0
      %434 = vmatprep.subr.mxu0 0.0
      %435 = vmatpush1.msra.mxu0 0.0
      %436 = vmatprep.subr.mxu0 0.0
      %437 = vmatpush1.msra.mxu0 0.0
      %438 = vmatprep.subr.mxu0 0.0
      %439 = vmatpush1.msra.mxu0 0.0
      %440 = vmatprep.subr.mxu0 0.0
      %441 = vmatpush1.msra.mxu0 0.0
      %442 = vmatprep.subr.mxu0 0.0
      %443 = vmatpush1.msra.mxu0 0.0
      %444 = vmatprep.subr.mxu0 0.0
      %445 = vmatpush1.msra.mxu0 0.0
      %446 = vmatprep.subr.mxu0 0.0
      %447 = vmatpush1.msra.mxu0 0.0
      %448 = vmatprep.subr.mxu0 0.0
      %449 = vmatpush1.msra.mxu0 0.0
      %450 = vmatprep.subr.mxu0 0.0
      %451 = vmatpush1.msra.mxu0 0.0
      %452 = vmatprep.subr.mxu0 0.0
      %453 = vmatpush1.msra.mxu0 0.0
      %454 = vmatprep.subr.mxu0 0.0
      %455 = vmatpush1.msra.mxu0 0.0
      %456 = vmatprep.subr.mxu0 0.0
      %457 = vmatpush1.msra.mxu0 0.0
      %458 = vmatprep.subr.mxu0 0.0
      %459 = vmatpush1.msra.mxu0 0.0
      %460 = vmatprep.subr.mxu0 0.0
      %461 = vmatpush1.msra.mxu0 0.0
      %462 = vmatprep.subr.mxu0 0.0
      %463 = vmatpush1.msra.mxu0 0.0
      %464 = vmatprep.subr.mxu0 0.0
      %465 = vmatpush1.msra.mxu0 0.0
      %466 = vmatprep.subr.mxu0 0.0
      %467 = vmatpush1.msra.mxu0 0.0
      %468 = vmatprep.subr.mxu0 0.0
      %469 = vmatpush1.msra.mxu0 0.0
      %470 = vmatprep.subr.mxu0 0.0
      %471 = vmatpush1.msra.mxu0 0.0
      %472 = vmatprep.subr.mxu0 0.0
      %473 = vmatpush1.msra.mxu0 0.0
      %474 = vmatprep.subr.mxu0 0.0
      %475 = vmatpush1.msra.mxu0 0.0
      %476 = vmatprep.subr.mxu0 0.0
      %477 = vmatpush1.msra.mxu0 0.0
      %478 = vmatprep.subr.mxu0 0.0
      %479 = vmatpush1.msra.mxu0 0.0
      %480 = vmatprep.subr.mxu0 0.0
      %481 = vmatpush1.msra.mxu0 0.0
      %482 = vmatprep.subr.mxu0 0.0
      %483 = vmatpush1.msra.mxu0 0.0
      %484 = vmatprep.subr.mxu0 0.0
      %485 = vmatpush1.msra.mxu0 0.0
      %486 = vmatprep.mubr.f32.mxu0 0.0
      %487 = vmatmul.mubr.f32.gmra.mrb[0].mxu0 %v415
      %v488 = vpop.f32.mrb[0].mxu0
      %v489 = vadd.f32 0.0, %v488
      %v490 = vpop.f32.mrb[0].mxu0
      %491 = vmatprep.mubr.f32.mxu0 0.0
      %492 = vmatmul.mubr.f32.gmra.mrb[0].mxu0 %v418
      %v493 = vpop.f32.mrb[0].mxu0
      %v494 = vadd.f32 0.0, %v493
      %v495 = vpop.f32.mrb[0].mxu0
      %496 = vdwg.mxu0
      %v497 = vmax.f32 %v489, 0.0
      %v498 = vmax.f32 %v494, 0.0
      %500 = vset.pattern.permute.xlu0 0
      %501 = vperm.xlu0 %500, %v385
      %v502 = vpop.permute.xlu0 %501
      %505 = vset.pattern.permute.xlu0 0
      %506 = vperm.xlu0 %505, %v386
      %v507 = vpop.permute.xlu0 %506
      %v509 = vmul.f32 %v497, %v502
      %v510 = vmul.f32 %v498, %v507
      %512 = vset.pattern.permute.xlu0 0
      %513 = vperm.xlu0 %512, %v387
      %v514 = vpop.permute.xlu0 %513
      %517 = vset.pattern.permute.xlu0 0
      %518 = vperm.xlu0 %517, %v388
      %v519 = vpop.permute.xlu0 %518
      %v521 = vadd.f32 %v509, %v514
      %v522 = vadd.f32 %v510, %v519
      %vm523 = vcmask 523264
      %v525 = vsel %vm523, %v521, 0
      %v528 = vsel %vm523, %v522, 0
      %530 = vmatprep.subr.mxu0 0.0
      %531 = vmatpush1.msra.mxu0 %v389
      %532 = vmatprep.subr.mxu0 0.0
      %533 = vmatpush1.msra.mxu0 %v390
      %534 = vmatprep.subr.mxu0 0.0
      %535 = vmatpush1.msra.mxu0 %v391
      %536 = vmatprep.subr.mxu0 0.0
      %537 = vmatpush1.msra.mxu0 %v392
      %538 = vmatprep.subr.mxu0 0.0
      %539 = vmatpush1.msra.mxu0 %v393
      %540 = vmatprep.subr.mxu0 0.0
      %541 = vmatpush1.msra.mxu0 %v394
      %542 = vmatprep.subr.mxu0 0.0
      %543 = vmatpush1.msra.mxu0 %v395
      %544 = vmatprep.subr.mxu0 0.0
      %545 = vmatpush1.msra.mxu0 %v396
      %546 = vmatprep.subr.mxu0 0.0
      %547 = vmatpush1.msra.mxu0 0.0
      %548 = vmatprep.subr.mxu0 0.0
      %549 = vmatpush1.msra.mxu0 0.0
      %550 = vmatprep.subr.mxu0 0.0
      %551 = vmatpush1.msra.mxu0 0.0
      %552 = vmatprep.subr.mxu0 0.0
      %553 = vmatpush1.msra.mxu0 0.0
      %554 = vmatprep.subr.mxu0 0.0
      %555 = vmatpush1.msra.mxu0 0.0
      %556 = vmatprep.subr.mxu0 0.0
      %557 = vmatpush1.msra.mxu0 0.0
      %558 = vmatprep.subr.mxu0 0.0
      %559 = vmatpush1.msra.mxu0 0.0
      %560 = vmatprep.subr.mxu0 0.0
      %561 = vmatpush1.msra.mxu0 0.0
      %562 = vmatprep.subr.mxu0 0.0
      %563 = vmatpush1.msra.mxu0 0.0
      %564 = vmatprep.subr.mxu0 0.0
      %565 = vmatpush1.msra.mxu0 0.0
      %566 = vmatprep.subr.mxu0 0.0
      %567 = vmatpush1.msra.mxu0 0.0
      %568 = vmatprep.subr.mxu0 0.0
      %569 = vmatpush1.msra.mxu0 0.0
      %570 = vmatprep.subr.mxu0 0.0
      %571 = vmatpush1.msra.mxu0 0.0
      %572 = vmatprep.subr.mxu0 0.0
      %573 = vmatpush1.msra.mxu0 0.0
      %574 = vmatprep.subr.mxu0 0.0
      %575 = vmatpush1.msra.mxu0 0.0
      %576 = vmatprep.subr.mxu0 0.0
      %577 = vmatpush1.msra.mxu0 0.0
      %578 = vmatprep.subr.mxu0 0.0
      %579 = vmatpush1.msra.mxu0 0.0
      %580 = vmatprep.subr.mxu0 0.0
      %581 = vmatpush1.msra.mxu0 0.0
      %582 = vmatprep.subr.mxu0 0.0
      %583 = vmatpush1.msra.mxu0 0.0
      %584 = vmatprep.subr.mxu0 0.0
      %585 = vmatpush1.msra.mxu0 0.0
      %586 = vmatprep.subr.mxu0 0.0
      %587 = vmatpush1.msra.mxu0 0.0
      %588 = vmatprep.subr.mxu0 0.0
      %589 = vmatpush1.msra.mxu0 0.0
      %590 = vmatprep.subr.mxu0 0.0
      %591 = vmatpush1.msra.mxu0 0.0
      %592 = vmatprep.subr.mxu0 0.0
      %593 = vmatpush1.msra.mxu0 0.0
      %594 = vmatprep.mubr.f32.mxu0 0.0
      %595 = vmatmul.mubr.f32.gmra.mrb[0].mxu0 %v525
      %v596 = vpop.f32.mrb[0].mxu0
      %v597 = vadd.f32 0.0, %v596
      %v598 = vpop.f32.mrb[0].mxu0
      %599 = vmatprep.mubr.f32.mxu0 0.0
      %600 = vmatmul.mubr.f32.gmra.mrb[0].mxu0 %v528
      %v601 = vpop.f32.mrb[0].mxu0
      %v602 = vadd.f32 0.0, %v601
      %v603 = vpop.f32.mrb[0].mxu0
      %604 = vdwg.mxu0
      %v605 = vld [vmem:[%s5] sm:$0xff]
      %v606 = vld [vmem:[%s5 + $0x8] sm:$0xff]
      %v607 = vld [vmem:[%s5 + $0x10] sm:$0xff]
      %v608 = vld [vmem:[%s5 + $0x18] sm:$0xff]
      %v609 = vld [vmem:[%s6] sm:$0xff]
      %v610 = vld [vmem:[%s6 + $0x8] sm:$0xff]
      %v611 = vld [vmem:[%s6 + $0x10] sm:$0xff]
      %v612 = vld [vmem:[%s6 + $0x18] sm:$0xff]
      %v613 = vld [vmem:[%s7] sm:$0xff]
      %v614 = vld [vmem:[%s7 + $0x8] sm:$0xff]
      %v615 = vld [vmem:[%s7 + $0x10] sm:$0xff]
      %v616 = vld [vmem:[%s7 + $0x18] sm:$0xff]
      %v617 = vld [vmem:[%s8] sm:$0x1]
      %620 = vrot.lane.b32.xlu0 %v597, 127
      %v621 = vpop.permute.xlu0 %620
      %622 = vrot.lane.b32.xlu0 %v602, 127
      %v623 = vpop.permute.xlu0 %622
      %626 = vrot.lane.b32.xlu0 %v597, 126
      %v627 = vpop.permute.xlu0 %626
      %628 = vrot.lane.b32.xlu0 %v602, 126
      %v629 = vpop.permute.xlu0 %628
      %632 = vrot.lane.b32.xlu0 %v597, 125
      %v633 = vpop.permute.xlu0 %632
      %634 = vrot.lane.b32.xlu0 %v602, 125
      %v635 = vpop.permute.xlu0 %634
      %638 = vrot.lane.b32.xlu0 %v597, 124
      %v639 = vpop.permute.xlu0 %638
      %640 = vrot.lane.b32.xlu0 %v602, 124
      %v641 = vpop.permute.xlu0 %640
      %vm644 = vcmask 654336
      %v646 = vsel %vm644, %v605, 0
      %v649 = vsel %vm644, %v606, 0
      %v652 = vsel %vm644, %v607, 0
      %v655 = vsel %vm644, %v608, 0
      %657 = vmatprep.subr.mxu0 0.0
      %658 = vmatpush1.msra.mxu0 %v597
      %659 = vmatprep.subr.mxu0 0.0
      %660 = vmatpush1.msra.mxu0 %v602
      %661 = vmatprep.subr.mxu0 0.0
      %662 = vmatpush1.msra.mxu0 %v621
      %663 = vmatprep.subr.mxu0 0.0
      %664 = vmatpush1.msra.mxu0 %v623
      %665 = vmatprep.subr.mxu0 0.0
      %666 = vmatpush1.msra.mxu0 %v627
      %667 = vmatprep.subr.mxu0 0.0
      %668 = vmatpush1.msra.mxu0 %v629
      %669 = vmatprep.subr.mxu0 0.0
      %670 = vmatpush1.msra.mxu0 %v633
      %671 = vmatprep.subr.mxu0 0.0
      %672 = vmatpush1.msra.mxu0 %v635
      %673 = vmatprep.subr.mxu0 0.0
      %674 = vmatpush1.msra.mxu0 %v639
      %675 = vmatprep.subr.mxu0 0.0
      %676 = vmatpush1.msra.mxu0 %v641
      %677 = vmatprep.subr.mxu0 0.0
      %678 = vmatpush1.msra.mxu0 0.0
      %679 = vmatprep.subr.mxu0 0.0
      %680 = vmatpush1.msra.mxu0 0.0
      %681 = vmatprep.subr.mxu0 0.0
      %682 = vmatpush1.msra.mxu0 0.0
      %683 = vmatprep.subr.mxu0 0.0
      %684 = vmatpush1.msra.mxu0 0.0
      %685 = vmatprep.subr.mxu0 0.0
      %686 = vmatpush1.msra.mxu0 0.0
      %687 = vmatprep.subr.mxu0 0.0
      %688 = vmatpush1.msra.mxu0 0.0
      %689 = vmatprep.subr.mxu0 0.0
      %690 = vmatpush1.msra.mxu0 0.0
      %691 = vmatprep.subr.mxu0 0.0
      %692 = vmatpush1.msra.mxu0 0.0
      %693 = vmatprep.subr.mxu0 0.0
      %694 = vmatpush1.msra.mxu0 0.0
      %695 = vmatprep.subr.mxu0 0.0
      %696 = vmatpush1.msra.mxu0 0.0
      %697 = vmatprep.subr.mxu0 0.0
      %698 = vmatpush1.msra.mxu0 0.0
      %699 = vmatprep.subr.mxu0 0.0
      %700 = vmatpush1.msra.mxu0 0.0
      %701 = vmatprep.subr.mxu0 0.0
      %702 = vmatpush1.msra.mxu0 0.0
      %703 = vmatprep.subr.mxu0 0.0
      %704 = vmatpush1.msra.mxu0 0.0
      %705 = vmatprep.subr.mxu0 0.0
      %706 = vmatpush1.msra.mxu0 0.0
      %707 = vmatprep.subr.mxu0 0.0
      %708 = vmatpush1.msra.mxu0 0.0
      %709 = vmatprep.subr.mxu0 0.0
      %710 = vmatpush1.msra.mxu0 0.0
      %711 = vmatprep.subr.mxu0 0.0
      %712 = vmatpush1.msra.mxu0 0.0
      %713 = vmatprep.subr.mxu0 0.0
      %714 = vmatpush1.msra.mxu0 0.0
      %715 = vmatprep.subr.mxu0 0.0
      %716 = vmatpush1.msra.mxu0 0.0
      %717 = vmatprep.subr.mxu0 0.0
      %718 = vmatpush1.msra.mxu0 0.0
      %719 = vmatprep.subr.mxu0 0.0
      %720 = vmatpush1.msra.mxu0 0.0
      %721 = vmatprep.mubr.f32.mxu0 0.0
      %722 = vmatmul.mubr.f32.gmra.mrb[0].mxu0 %v646
      %v723 = vpop.f32.mrb[0].mxu0
      %v724 = vadd.f32 0.0, %v723
      %v725 = vpop.f32.mrb[0].mxu0
      %726 = vmatprep.mubr.f32.mxu0 0.0
      %727 = vmatmul.mubr.f32.gmra.mrb[0].mxu0 %v649
      %v728 = vpop.f32.mrb[0].mxu0
      %v729 = vadd.f32 0.0, %v728
      %v730 = vpop.f32.mrb[0].mxu0
      %731 = vmatprep.mubr.f32.mxu0 0.0
      %732 = vmatmul.mubr.f32.gmra.mrb[0].mxu0 %v652
      %v733 = vpop.f32.mrb[0].mxu0
      %v734 = vadd.f32 0.0, %v733
      %v735 = vpop.f32.mrb[0].mxu0
      %736 = vmatprep.mubr.f32.mxu0 0.0
      %737 = vmatmul.mubr.f32.gmra.mrb[0].mxu0 %v655
      %v738 = vpop.f32.mrb[0].mxu0
      %v739 = vadd.f32 0.0, %v738
      %v740 = vpop.f32.mrb[0].mxu0
      %741 = vdwg.mxu0
      %v742 = vmax.f32 %v724, 0.0
      %v743 = vmax.f32 %v729, 0.0
      %v744 = vmax.f32 %v734, 0.0
      %v745 = vmax.f32 %v739, 0.0
      %747 = vset.pattern.permute.xlu0 0
      %748 = vperm.xlu0 %747, %v609
      %v749 = vpop.permute.xlu0 %748
      %752 = vset.pattern.permute.xlu0 0
      %753 = vperm.xlu0 %752, %v610
      %v754 = vpop.permute.xlu0 %753
      %757 = vset.pattern.permute.xlu0 0
      %758 = vperm.xlu0 %757, %v611
      %v759 = vpop.permute.xlu0 %758
      %762 = vset.pattern.permute.xlu0 0
      %763 = vperm.xlu0 %762, %v612
      %v764 = vpop.permute.xlu0 %763
      %v766 = vmul.f32 %v742, %v749
      %v767 = vmul.f32 %v743, %v754
      %v768 = vmul.f32 %v744, %v759
      %v769 = vmul.f32 %v745, %v764
      %771 = vset.pattern.permute.xlu0 0
      %772 = vperm.xlu0 %771, %v613
      %v773 = vpop.permute.xlu0 %772
      %776 = vset.pattern.permute.xlu0 0
      %777 = vperm.xlu0 %776, %v614
      %v778 = vpop.permute.xlu0 %777
      %781 = vset.pattern.permute.xlu0 0
      %782 = vperm.xlu0 %781, %v615
      %v783 = vpop.permute.xlu0 %782
      %786 = vset.pattern.permute.xlu0 0
      %787 = vperm.xlu0 %786, %v616
      %v788 = vpop.permute.xlu0 %787
      %v790 = vadd.f32 %v766, %v773
      %v791 = vadd.f32 %v767, %v778
      %v792 = vadd.f32 %v768, %v783
      %v793 = vadd.f32 %v769, %v788
      %v794 = vld [vmem:[%s9] sm:$0x3f]
      %v795 = vld [vmem:[%s10] sm:$0x3f]
      %vm796 = vcmask 261120
      %v798 = vsel %vm796, %v794, 0
      %800 = vmatprep.subr.mxu0 0.0
      %801 = vmatpush1.msra.mxu0 %v790
      %802 = vmatprep.subr.mxu0 0.0
      %803 = vmatpush1.msra.mxu0 %v791
      %804 = vmatprep.subr.mxu0 0.0
      %805 = vmatpush1.msra.mxu0 %v792
      %806 = vmatprep.subr.mxu0 0.0
      %807 = vmatpush1.msra.mxu0 %v793
      %808 = vmatprep.subr.mxu0 0.0
      %809 = vmatpush1.msra.mxu0 0.0
      %810 = vmatprep.subr.mxu0 0.0
      %811 = vmatpush1.msra.mxu0 0.0
      %812 = vmatprep.subr.mxu0 0.0
      %813 = vmatpush1.msra.mxu0 0.0
      %814 = vmatprep.subr.mxu0 0.0
      %815 = vmatpush1.msra.mxu0 0.0
      %816 = vmatprep.subr.mxu0 0.0
      %817 = vmatpush1.msra.mxu0 0.0
      %818 = vmatprep.subr.mxu0 0.0
      %819 = vmatpush1.msra.mxu0 0.0
      %820 = vmatprep.subr.mxu0 0.0
      %821 = vmatpush1.msra.mxu0 0.0
      %822 = vmatprep.subr.mxu0 0.0
      %823 = vmatpush1.msra.mxu0 0.0
      %824 = vmatprep.subr.mxu0 0.0
      %825 = vmatpush1.msra.mxu0 0.0
      %826 = vmatprep.subr.mxu0 0.0
      %827 = vmatpush1.msra.mxu0 0.0
      %828 = vmatprep.subr.mxu0 0.0
      %829 = vmatpush1.msra.mxu0 0.0
      %830 = vmatprep.subr.mxu0 0.0
      %831 = vmatpush1.msra.mxu0 0.0
      %832 = vmatprep.subr.mxu0 0.0
      %833 = vmatpush1.msra.mxu0 0.0
      %834 = vmatprep.subr.mxu0 0.0
      %835 = vmatpush1.msra.mxu0 0.0
      %836 = vmatprep.subr.mxu0 0.0
      %837 = vmatpush1.msra.mxu0 0.0
      %838 = vmatprep.subr.mxu0 0.0
      %839 = vmatpush1.msra.mxu0 0.0
      %840 = vmatprep.subr.mxu0 0.0
      %841 = vmatpush1.msra.mxu0 0.0
      %842 = vmatprep.subr.mxu0 0.0
      %843 = vmatpush1.msra.mxu0 0.0
      %844 = vmatprep.subr.mxu0 0.0
      %845 = vmatpush1.msra.mxu0 0.0
      %846 = vmatprep.subr.mxu0 0.0
      %847 = vmatpush1.msra.mxu0 0.0
      %848 = vmatprep.subr.mxu0 0.0
      %849 = vmatpush1.msra.mxu0 0.0
      %850 = vmatprep.subr.mxu0 0.0
      %851 = vmatpush1.msra.mxu0 0.0
      %852 = vmatprep.subr.mxu0 0.0
      %853 = vmatpush1.msra.mxu0 0.0
      %854 = vmatprep.subr.mxu0 0.0
      %855 = vmatpush1.msra.mxu0 0.0
      %856 = vmatprep.subr.mxu0 0.0
      %857 = vmatpush1.msra.mxu0 0.0
      %858 = vmatprep.subr.mxu0 0.0
      %859 = vmatpush1.msra.mxu0 0.0
      %860 = vmatprep.subr.mxu0 0.0
      %861 = vmatpush1.msra.mxu0 0.0
      %862 = vmatprep.subr.mxu0 0.0
      %863 = vmatpush1.msra.mxu0 0.0
      %864 = vmatprep.mubr.f32.mxu0 0.0
      %865 = vmatmul.mubr.f32.gmra.mrb[0].mxu0 %v798
      %v866 = vpop.f32.mrb[0].mxu0
      %v867 = vadd.f32 0.0, %v866
      %v868 = vpop.f32.mrb[0].mxu0
      %869 = vdwg.mxu0
      %v871 = vlaneseq
      %v872 = vshrl.u32 %v871, 7
      %v873 = vsub.s32 0, %v872
      %v874 = vrot.slane %v617, %v873
      %v876 = vmul.f32 %v867, %v874
      %vm877 = vcmask 267264
      %v878 = vsel %vm877, %v876, 0.0
      %879 = vadd.xlane.f32.xlu0 %v878
      %v880 = vpop.xlane.xlu0 %879
      %v881 = vadd.f32 %v880, %v795
      %vm882 = vcmask 5120
      %883 = vst.msk [vmem:[%s381] sm:$0x3f] %vm882, %v881
      %p884 = scmp.lt.s32.totalorder %s22, 1
      %s885 = scalar_select %p884, %s22, 1
      %s886 = smul.addr %s885, 8
      %s887 = scalar_lea.vmem %s11, %s886
      // Predicated region
      $region65: #{_lambda_.1} parent=63 // pred_check
        %p888 = pneg %p276
      $region66: #{_lambda_.1} parent=63 // pred_check_branch
        %890 = sbr.rel (%p888) target = $region68
      $region67: #{_lambda_.1} parent=63 // pred_region
        _
      $region68: #{_lambda_.1} parent=63 // pred_fallthru
        _
    $region64: #{_lambda_.1} parent=5 // pred_fallthru
      _
    %p891 = scmp.le.s32.totalorder 2, %s17
    // Predicated region
    $region69: #{_lambda_.1} parent=5 // pred_check
      %p892 = pneg %p891
    $region70: #{_lambda_.1} parent=5 // pred_check_branch
      %894 = sbr.rel (%p892) target = $region72
    $region71: #{_lambda_.1} parent=5 // pred_region
      %s895 = ssub.s32 %s17, 2
      // Predicated region
      $region73: #{_lambda_.1} parent=71 // pred_check
        %p896 = pneg %p282
      $region74: #{_lambda_.1} parent=71 // pred_check_branch
        %898 = sbr.rel (%p896) target = $region76
      $region75: #{_lambda_.1} parent=71 // pred_region
        %p899 = scmp.lt.s32.totalorder %s23, 1
        %s900 = scalar_select %p899, %s23, 1
        %s901 = smul.addr %s900, 8
        %s902 = scalar_lea.vmem %s11, %s901
      $region76: #{_lambda_.1} parent=71 // pred_fallthru
        _
    $region72: #{_lambda_.1} parent=5 // pred_fallthru
      _
  $region6: #{_lambda_.1} parent=0 // loop_footer
    %s21 = sadd.s32 1, %s17
  $region7: #{_lambda_.1} parent=0 // loop_footer_branch
    %16 = sbr.rel target = $region3
  $region8: #{_lambda_.1} parent=0 // loop_exit
    _

</llo_original>
